<compile_context>
chip_gen: v7x
topology: tpu7x:2x2x1
jax: 0.10.0
libtpu: 0.0.40
codegen_flags: <defaults>
</compile_context>

<pallas_src>
import jax
import jax.numpy as jnp
from jax.experimental import pallas as pl
from jax.experimental.pallas import tpu as pltpu

H_IN = 4       # input features
H = 100        # logical hidden width
H_PAD = 128    # lane-padded hidden width

_MAX_TM = 4096     # caps worst-case VMEM budget at ~25 MiB (v7x-safe)
_MIN_SPLIT = 1024  # below this batch, 2 grid steps cost more than they help


def _cdiv(a, b):
    return -(-a // b)


def _round_up(x, m):
    return ((x + m - 1) // m) * m


def _compute_tiling(B, tm):
    """Balanced batch tiling: (TM, B_pad, n_steps)."""
    tm = max(8, min(tm, _MAX_TM))
    n_steps = _cdiv(B, tm)
    # v7x has 2 TensorCores per chip; keep >=2 "parallel" grid steps on large
    # batches so the batch axis can shard across both. v5e/v6e: 1 TC, harmless.
    if n_steps == 1 and B >= _MIN_SPLIT:
        n_steps = 2
    # Even out the tiles so padding waste is <8 rows per step (not up to TM-1).
    TM = _round_up(_cdiv(B, n_steps), 8)
    B_pad = n_steps * TM
    return TM, B_pad, n_steps


def _dnet_gauss_kernel(x_ref, w1_ref, b1_ref, w2_ref, b2_ref, w3_ref, b3_ref,
                       o_ref):
    x = x_ref[...]      # (TM, 4) f32
    w1 = w1_ref[...]    # (4, H_PAD) f32

    # ---- lin1 on the VPU: K=4 broadcast multiplies. Two independent partial
    # sums keep the 4 VALUs fed instead of a 4-deep dependent add chain.
    p0 = x[:, 0:1] * w1[0:1, :] + x[:, 1:2] * w1[1:2, :]
    p1 = x[:, 2:3] * w1[2:3, :] + x[:, 3:4] * w1[3:4, :]
    # dropout(p=0.2) is identity in eval mode
    h1 = jnp.maximum(p0 + p1 + b1_ref[...], 0.0)   # (TM, H_PAD); pad lanes = 0

    # ---- lin2 on the MXU in bf16 with f32 accumulation (dominant FLOPs).
    h2 = jnp.dot(h1.astype(jnp.bfloat16), w2_ref[...],
                 preferred_element_type=jnp.float32)
    h2 = jnp.maximum(h2 + b2_ref[...], 0.0)        # (TM, H_PAD); pad lanes = 0

    # ---- lin3 (128 -> 1): VPU multiply + XLU lane reduction; w3 is (1, H_PAD).
    out = jnp.sum(h2 * w3_ref[...], axis=-1, keepdims=True) + b3_ref[...]
    o_ref[...] = out.astype(o_ref.dtype)           # (TM, 1)


def d_net_gauss_forward(x, kernel_params, *, tm=2048):
    """x: (B, 4) float32. kernel_params: padded/packed params (see pack_params)."""
    B = x.shape[0]
    TM, B_pad, n_steps = _compute_tiling(B, tm)
    if B_pad != B:
        x = jnp.pad(x, ((0, B_pad - B), (0, 0)))

    w1 = kernel_params["w1"]  # (4, 128)   f32
    b1 = kernel_params["b1"]  # (1, 128)   f32
    w2 = kernel_params["w2"]  # (128, 128) bf16
    b2 = kernel_params["b2"]  # (1, 128)   f32
    w3 = kernel_params["w3"]  # (1, 128)   f32
    b3 = kernel_params["b3"]  # (1, 1)     f32

    weight_bytes = (w1.size + b1.size + b2.size + w3.size + b3.size) * 4 \
        + w2.size * 2

    # Explicit VMEM budget (v7x: 64 MiB physical / 32 MiB default scoped):
    #   x block lane-pads (TM,4)->(TM,128) f32, double-buffered : 2 * TM*512 B
    #   out block (TM,1)->(TM,128) f32, double-buffered         : 2 * TM*512 B
    #   in-kernel (TM,128) f32/bf16 intermediates (h1/h2/temps) : ~4 * TM*512 B
    per_step_bytes = 8 * TM * 512
    vmem_limit_bytes = int(min(max(per_step_bytes + weight_bytes + (8 << 20),
                                   16 << 20),
                               40 << 20))

    cost = pl.CostEstimate(
        flops=2 * B_pad * (H_IN * H + H * H + H),
        transcendentals=0,
        bytes_accessed=B_pad * H_IN * 4 + B_pad * 1 * 4 + weight_bytes,
    )

    out = pl.pallas_call(
        _dnet_gauss_kernel,
        out_shape=jax.ShapeDtypeStruct((B_pad, 1), jnp.float32),
        grid=(n_steps,),
        in_specs=[
            pl.BlockSpec((TM, H_IN), lambda i: (i, 0)),       # x (batch-tiled)
            pl.BlockSpec((H_IN, H_PAD), lambda i: (0, 0)),    # w1 (resident)
            pl.BlockSpec((1, H_PAD), lambda i: (0, 0)),       # b1
            pl.BlockSpec((H_PAD, H_PAD), lambda i: (0, 0)),   # w2 (bf16)
            pl.BlockSpec((1, H_PAD), lambda i: (0, 0)),       # b2
            pl.BlockSpec((1, H_PAD), lambda i: (0, 0)),       # w3 row
            pl.BlockSpec((1, 1), lambda i: (0, 0)),           # b3
        ],
        out_specs=pl.BlockSpec((TM, 1), lambda i: (i, 0)),
        compiler_params=pltpu.CompilerParams(
            dimension_semantics=("parallel",),
            vmem_limit_bytes=vmem_limit_bytes),
        cost_estimate=cost,
    )(x, w1, b1, w2, b2, w3, b3)
    return out[:B]


def init_params(key):
    """PyTorch-Linear-style init U(-1/sqrt(in), 1/sqrt(in)).

    Logical (unpadded) params; weights stored transposed as (in, out) = W.T,
    biases as (1, out).
    """
    dims = [(H_IN, H), (H, H), (H, 1)]
    params = {}
    keys = jax.random.split(key, 2 * len(dims))
    for i, (din, dout) in enumerate(dims):
        bound = 1.0 / (din ** 0.5)
        w = jax.random.uniform(keys[2 * i], (din, dout), jnp.float32,
                               minval=-bound, maxval=bound)
        b = jax.random.uniform(keys[2 * i + 1], (1, dout), jnp.float32,
                               minval=-bound, maxval=bound)
        params[f"w{i + 1}"] = w
        params[f"b{i + 1}"] = b
    return params


def pack_params(params):
    """Zero-pad hidden dim 100 -> 128 and cast the big matmul's weight to bf16."""
    pad_h = H_PAD - H
    w1 = jnp.pad(params["w1"], ((0, 0), (0, pad_h)))                    # (4,128)
    b1 = jnp.pad(params["b1"], ((0, 0), (0, pad_h)))                    # (1,128)
    w2 = jnp.pad(params["w2"], ((0, pad_h), (0, pad_h)))                # (128,128)
    w2 = w2.astype(jnp.bfloat16)
    b2 = jnp.pad(params["b2"], ((0, 0), (0, pad_h)))                    # (1,128)
    w3 = jnp.pad(params["w3"].T, ((0, 0), (0, pad_h)))                  # (1,128)
    b3 = params["b3"]                                                   # (1,1)
    return dict(w1=w1, b1=b1, w2=w2, b2=b2, w3=w3, b3=b3)


def _reference_forward_f32(x, params):
    """Pure f32 reference with PyTorch eval-mode semantics."""
    h1 = jnp.maximum(x @ params["w1"] + params["b1"], 0.0)
    h2 = jnp.maximum(h1 @ params["w2"] + params["b2"], 0.0)
    return h2 @ params["w3"] + params["b3"]


def _reference_forward_matched(x, params):
    """Reference matching the kernel's bf16 MXU layer (tight-tolerance check)."""
    h1 = jnp.maximum(x @ params["w1"] + params["b1"], 0.0)
    h2 = jnp.dot(h1.astype(jnp.bfloat16),
                 params["w2"].astype(jnp.bfloat16),
                 preferred_element_type=jnp.float32)
    h2 = jnp.maximum(h2 + params["b2"], 0.0)
    return h2 @ params["w3"] + params["b3"]


if __name__ == "__main__":
    key = jax.random.PRNGKey(0)
    k_param, k_x1, k_x2 = jax.random.split(key, 3)

    params = init_params(k_param)
    kernel_params = pack_params(params)

    # ---- small primary check (B = 8, single grid step) -------------------
    x_small = jax.random.normal(k_x1, (8, H_IN), dtype=jnp.float32)
    out_small = jax.block_until_ready(d_net_gauss_forward(x_small, kernel_params))
    assert out_small.shape == (8, 1)

    ref_matched = _reference_forward_matched(x_small, params)
    ref_f32 = _reference_forward_f32(x_small, params)
    err_m = float(jnp.max(jnp.abs(out_small - ref_matched)))
    err_f = float(jnp.max(jnp.abs(out_small - ref_f32)))
    assert jnp.allclose(out_small, ref_matched, atol=2e-3, rtol=2e-3), \
        f"bf16-matched check failed, max abs err {err_m}"
    # Honest check against true f32 (PyTorch) semantics; bf16 lin2 deviates
    # by at most ~1e-2 at these magnitudes.
    assert jnp.allclose(out_small, ref_f32, atol=3e-2, rtol=3e-2), \
        f"f32-reference check failed, max abs err {err_f}"

    # ---- multi-step grid + uneven batch (exercises balanced tiling) -------
    x_big = jax.random.normal(k_x2, (300, H_IN), dtype=jnp.float32)
    out_big = jax.block_until_ready(
        d_net_gauss_forward(x_big, kernel_params, tm=128))
    assert out_big.shape == (300, 1)
    ref_big = _reference_forward_f32(x_big, params)
    err_b = float(jnp.max(jnp.abs(out_big - ref_big)))
    assert jnp.allclose(out_big, ref_big, atol=3e-2, rtol=3e-2), \
        f"multi-step check failed, max abs err {err_b}"

    print("KERNEL_OK")
</pallas_src>

<mosaic_0001>
module attributes {stable_mosaic.version = 11 : i64} {
  func.func @_dnet_gauss_kernel(%arg0: i32, %arg1: memref<8x4xf32, #tpu.memory_space<vmem>>, %arg2: memref<4x128xf32, #tpu.memory_space<vmem>>, %arg3: memref<1x128xf32, #tpu.memory_space<vmem>>, %arg4: memref<128x128xbf16, #tpu.memory_space<vmem>>, %arg5: memref<1x128xf32, #tpu.memory_space<vmem>>, %arg6: memref<1x128xf32, #tpu.memory_space<vmem>>, %arg7: memref<1x1xf32, #tpu.memory_space<vmem>>, %arg8: memref<8x1xf32, #tpu.memory_space<vmem>>) attributes {dimension_semantics = [#tpu.dimension_semantics<parallel>], iteration_bounds = array<i64: 1>, scalar_prefetch = 0 : i64, scratch_operands = 0 : i64, tpu.core_type = #tpu.core_type<tc>, window_params = [{transform_indices = @transform_0, window_bounds = array<i64: 8, 4>}, {pipeline_mode = #tpu.pipeline_mode<synchronous>, transform_indices = @transform_1, window_bounds = array<i64: 4, 128>}, {pipeline_mode = #tpu.pipeline_mode<synchronous>, transform_indices = @transform_2, window_bounds = array<i64: 1, 128>}, {pipeline_mode = #tpu.pipeline_mode<synchronous>, transform_indices = @transform_3, window_bounds = array<i64: 128, 128>}, {pipeline_mode = #tpu.pipeline_mode<synchronous>, transform_indices = @transform_4, window_bounds = array<i64: 1, 128>}, {pipeline_mode = #tpu.pipeline_mode<synchronous>, transform_indices = @transform_5, window_bounds = array<i64: 1, 128>}, {pipeline_mode = #tpu.pipeline_mode<synchronous>, transform_indices = @transform_6, window_bounds = array<i64: 1, 1>}, {transform_indices = @transform_7, window_bounds = array<i64: 8, 1>}]} {
    %c0 = arith.constant 0 : index
    %c0_0 = arith.constant 0 : index
    %0 = vector.load %arg1[%c0, %c0_0] : memref<8x4xf32, #tpu.memory_space<vmem>>, vector<8x4xf32>
    %c0_1 = arith.constant 0 : index
    %c0_2 = arith.constant 0 : index
    %1 = vector.load %arg2[%c0_1, %c0_2] : memref<4x128xf32, #tpu.memory_space<vmem>>, vector<4x128xf32>
    %2 = vector.extract_strided_slice %0 {offsets = [0, 0], sizes = [8, 1], strides = [1, 1]} : vector<8x4xf32> to vector<8x1xf32>
    %3 = vector.extract_strided_slice %1 {offsets = [0, 0], sizes = [1, 128], strides = [1, 1]} : vector<4x128xf32> to vector<1x128xf32>
    %4 = vector.broadcast %2 : vector<8x1xf32> to vector<8x128xf32>
    %5 = vector.broadcast %3 : vector<1x128xf32> to vector<8x128xf32>
    %6 = arith.mulf %4, %5 : vector<8x128xf32>
    %7 = vector.extract_strided_slice %0 {offsets = [0, 1], sizes = [8, 1], strides = [1, 1]} : vector<8x4xf32> to vector<8x1xf32>
    %8 = vector.extract_strided_slice %1 {offsets = [1, 0], sizes = [1, 128], strides = [1, 1]} : vector<4x128xf32> to vector<1x128xf32>
    %9 = vector.broadcast %7 : vector<8x1xf32> to vector<8x128xf32>
    %10 = vector.broadcast %8 : vector<1x128xf32> to vector<8x128xf32>
    %11 = arith.mulf %9, %10 : vector<8x128xf32>
    %12 = arith.addf %6, %11 : vector<8x128xf32>
    %13 = vector.extract_strided_slice %0 {offsets = [0, 2], sizes = [8, 1], strides = [1, 1]} : vector<8x4xf32> to vector<8x1xf32>
    %14 = vector.extract_strided_slice %1 {offsets = [2, 0], sizes = [1, 128], strides = [1, 1]} : vector<4x128xf32> to vector<1x128xf32>
    %15 = vector.broadcast %13 : vector<8x1xf32> to vector<8x128xf32>
    %16 = vector.broadcast %14 : vector<1x128xf32> to vector<8x128xf32>
    %17 = arith.mulf %15, %16 : vector<8x128xf32>
    %18 = vector.extract_strided_slice %0 {offsets = [0, 3], sizes = [8, 1], strides = [1, 1]} : vector<8x4xf32> to vector<8x1xf32>
    %19 = vector.extract_strided_slice %1 {offsets = [3, 0], sizes = [1, 128], strides = [1, 1]} : vector<4x128xf32> to vector<1x128xf32>
    %20 = vector.broadcast %18 : vector<8x1xf32> to vector<8x128xf32>
    %21 = vector.broadcast %19 : vector<1x128xf32> to vector<8x128xf32>
    %22 = arith.mulf %20, %21 : vector<8x128xf32>
    %23 = arith.addf %17, %22 : vector<8x128xf32>
    %24 = arith.addf %12, %23 : vector<8x128xf32>
    %c0_3 = arith.constant 0 : index
    %c0_4 = arith.constant 0 : index
    %25 = vector.load %arg3[%c0_3, %c0_4] : memref<1x128xf32, #tpu.memory_space<vmem>>, vector<1x128xf32>
    %26 = vector.broadcast %25 : vector<1x128xf32> to vector<8x128xf32>
    %27 = arith.addf %24, %26 : vector<8x128xf32>
    %cst = arith.constant 0.000000e+00 : f32
    %28 = vector.broadcast %cst : f32 to vector<8x128xf32>
    %29 = arith.maximumf %27, %28 : vector<8x128xf32>
    %30 = arith.truncf %29 : vector<8x128xf32> to vector<8x128xbf16>
    %c0_5 = arith.constant 0 : index
    %c0_6 = arith.constant 0 : index
    %31 = vector.load %arg4[%c0_5, %c0_6] : memref<128x128xbf16, #tpu.memory_space<vmem>>, vector<128x128xbf16>
    %cst_7 = arith.constant dense<0.000000e+00> : vector<8x128xf32>
    %32 = tpu.matmul %30, %31, %cst_7 {dimension_numbers = #tpu.dot_dimension_numbers<[1], [0], [0], [1], [0, 0, 1, 1], [], []>} : vector<8x128xbf16>, vector<128x128xbf16>, vector<8x128xf32> -> vector<8x128xf32>
    %c0_8 = arith.constant 0 : index
    %c0_9 = arith.constant 0 : index
    %33 = vector.load %arg5[%c0_8, %c0_9] : memref<1x128xf32, #tpu.memory_space<vmem>>, vector<1x128xf32>
    %34 = vector.broadcast %33 : vector<1x128xf32> to vector<8x128xf32>
    %35 = arith.addf %32, %34 : vector<8x128xf32>
    %cst_10 = arith.constant 0.000000e+00 : f32
    %36 = vector.broadcast %cst_10 : f32 to vector<8x128xf32>
    %37 = arith.maximumf %35, %36 : vector<8x128xf32>
    %c0_11 = arith.constant 0 : index
    %c0_12 = arith.constant 0 : index
    %38 = vector.load %arg6[%c0_11, %c0_12] : memref<1x128xf32, #tpu.memory_space<vmem>>, vector<1x128xf32>
    %39 = vector.broadcast %38 : vector<1x128xf32> to vector<8x128xf32>
    %40 = arith.mulf %37, %39 : vector<8x128xf32>
    %cst_13 = arith.constant dense<0.000000e+00> : vector<8xf32>
    %41 = vector.multi_reduction <add>, %40, %cst_13 [1] : vector<8x128xf32> to vector<8xf32>
    %42 = vector.shape_cast %41 : vector<8xf32> to vector<8x1xf32>
    %c0_14 = arith.constant 0 : index
    %c0_15 = arith.constant 0 : index
    %43 = vector.load %arg7[%c0_14, %c0_15] : memref<1x1xf32, #tpu.memory_space<vmem>>, vector<1x1xf32>
    %44 = vector.broadcast %43 : vector<1x1xf32> to vector<8x1xf32>
    %45 = arith.addf %42, %44 : vector<8x1xf32>
    %c0_16 = arith.constant 0 : index
    %c0_17 = arith.constant 0 : index
    %46 = vector.load %arg8[%c0_16, %c0_17] : memref<8x1xf32, #tpu.memory_space<vmem>>, vector<8x1xf32>
    tpu.vector_store %arg8[%c0_16, %c0_17], %45 {strides = array<i32>} : memref<8x1xf32, #tpu.memory_space<vmem>>, vector<8x1xf32>,
    return
  }
  func.func @transform_0(%arg0: i32) -> (i32, i32) {
    %c0_i32 = arith.constant 0 : i32
    %c0_i32_0 = arith.constant 0 : i32
    return %arg0, %c0_i32 : i32, i32
  }
  func.func @transform_1(%arg0: i32) -> (i32, i32) {
    %c0_i32 = arith.constant 0 : i32
    %c0_i32_0 = arith.constant 0 : i32
    %c0_i32_1 = arith.constant 0 : i32
    return %c0_i32, %c0_i32_0 : i32, i32
  }
  func.func @transform_2(%arg0: i32) -> (i32, i32) {
    %c0_i32 = arith.constant 0 : i32
    %c0_i32_0 = arith.constant 0 : i32
    %c0_i32_1 = arith.constant 0 : i32
    return %c0_i32, %c0_i32_0 : i32, i32
  }
  func.func @transform_3(%arg0: i32) -> (i32, i32) {
    %c0_i32 = arith.constant 0 : i32
    %c0_i32_0 = arith.constant 0 : i32
    %c0_i32_1 = arith.constant 0 : i32
    return %c0_i32, %c0_i32_0 : i32, i32
  }
  func.func @transform_4(%arg0: i32) -> (i32, i32) {
    %c0_i32 = arith.constant 0 : i32
    %c0_i32_0 = arith.constant 0 : i32
    %c0_i32_1 = arith.constant 0 : i32
    return %c0_i32, %c0_i32_0 : i32, i32
  }
  func.func @transform_5(%arg0: i32) -> (i32, i32) {
    %c0_i32 = arith.constant 0 : i32
    %c0_i32_0 = arith.constant 0 : i32
    %c0_i32_1 = arith.constant 0 : i32
    return %c0_i32, %c0_i32_0 : i32, i32
  }
  func.func @transform_6(%arg0: i32) -> (i32, i32) {
    %c0_i32 = arith.constant 0 : i32
    %c0_i32_0 = arith.constant 0 : i32
    %c0_i32_1 = arith.constant 0 : i32
    return %c0_i32, %c0_i32_0 : i32, i32
  }
  func.func @transform_7(%arg0: i32) -> (i32, i32) {
    %c0_i32 = arith.constant 0 : i32
    %c0_i32_0 = arith.constant 0 : i32
    return %arg0, %c0_i32 : i32, i32
  }
}

</mosaic_0001>

<llo_original>
// kernel: tpu_custom_call.1
$region0: #{tpu_custom_call.1}
  #allocation0 [shape = 'u32[]', space=smem, size = 0x4, offset = 0x4, fixed_abs, tag = 'smem constant byte address 0x4 - core index']
  #allocation1 [shape = 'u32[144,128]{1,0:T(1,128)}', space=vmem, size = 0x12000, scoped, tag = 'internal scratch']
  #allocation2 [shape = 'f32[1,1]{1,0:T(1,128)S(1)}', space=vmem, size = 0x200, scoped, tag = 'scoped memory for tpu_custom_call.1']
  %s0 = inlined_call_operand.vmem [shape: f32[8,4], index: 0, kind: input, shape index: {}]
  %s1 = inlined_call_operand.vmem [shape: f32[4,128], index: 1, kind: input, shape index: {}]
  %s2 = inlined_call_operand.vmem [shape: f32[1,128], index: 2, kind: input, shape index: {}]
  %s3 = inlined_call_operand.hbm [shape: bf16[128,128], index: 3, kind: input, shape index: {}]
  %s4 = inlined_call_operand.vmem [shape: f32[1,128], index: 4, kind: input, shape index: {}]
  %s5 = inlined_call_operand.vmem [shape: f32[1,128], index: 5, kind: input, shape index: {}]
  %s6 = inlined_call_operand.<no memory space> [shape: f32[1,1], index: 6, kind: input, shape index: {}]
  %s7 = inlined_call_operand.vmem [shape: f32[8,1], index: 7, kind: output, shape index: {}]
  %s8 = sld [smem:[#allocation0]]
  $region42: #{tpu_custom_call.1} parent=0
    _
  %s10 = ssub.s32 1, %s8
  %s11 = scalar_select 0, %s10, %s8
  %v12 = vstv %s6
  %13 = vst [vmem:[#allocation2] sm:$0x1] %v12
  $region1: #{tpu_custom_call.1} parent=0
    #allocation3 [shape = 'u8[32768]{0}', space=vmem, size = 0x8000, scoped, tag = 'input window, operand 3, single buffered']
    #allocation4 [shape = 's32[1]{0}', space=sflag, size = 0x4, scoped, tag = 'scoped memory for tpu_custom_call.1']
    %14 = vsyncpa [#allocation4], 0
    // Predicated region
    $region2: #{tpu_custom_call.1} parent=1 // pred_check
      _
    $region3: #{tpu_custom_call.1} parent=1 // pred_check_branch
      %16 = sbr.rel (0) target = $region5
    $region4: #{tpu_custom_call.1} parent=1 // pred_region
      _
    $region5: #{tpu_custom_call.1} parent=1 // pred_fallthru
      _
    // Predicated region
    $region6: #{tpu_custom_call.1} parent=1 // pred_check
      _
    $region7: #{tpu_custom_call.1} parent=1 // pred_check_branch
      %18 = sbr.rel (0) target = $region9
    $region8: #{tpu_custom_call.1} parent=1 // pred_region
      _
    $region9: #{tpu_custom_call.1} parent=1 // pred_fallthru
      _
    // Predicated region
    $region10: #{tpu_custom_call.1} parent=1 // pred_check
      _
    $region11: #{tpu_custom_call.1} parent=1 // pred_check_branch
      %20 = sbr.rel (0) target = $region13
    $region12: #{tpu_custom_call.1} parent=1 // pred_region
      _
    $region13: #{tpu_custom_call.1} parent=1 // pred_fallthru
      _
    // Predicated region
    $region14: #{tpu_custom_call.1} parent=1 // pred_check
      _
    $region15: #{tpu_custom_call.1} parent=1 // pred_check_branch
      %22 = sbr.rel (0) target = $region17
    $region16: #{tpu_custom_call.1} parent=1 // pred_region
      %s24 = ssub.s32 1024, 1024
      %25 = vsyncadd [#allocation4], %s24
      %s26 = sshll.u32 [#allocation3], 4
      %s27 = int_to_ptr.vmem [resolvable:$true] %s26
      %32 = dma.hbm_to_vmem [thread:$0]  %s3, 1024, %s27, [#allocation4], 64, 64, 4
    $region17: #{tpu_custom_call.1} parent=1 // pred_fallthru
      _
    // Predicated region
    $region18: #{tpu_custom_call.1} parent=1 // pred_check
      _
    $region19: #{tpu_custom_call.1} parent=1 // pred_check_branch
      %34 = sbr.rel (0) target = $region21
    $region20: #{tpu_custom_call.1} parent=1 // pred_region
      _
    $region21: #{tpu_custom_call.1} parent=1 // pred_fallthru
      _
    // Predicated region
    $region22: #{tpu_custom_call.1} parent=1 // pred_check
      _
    $region23: #{tpu_custom_call.1} parent=1 // pred_check_branch
      %36 = sbr.rel (0) target = $region25
    $region24: #{tpu_custom_call.1} parent=1 // pred_region
      _
    $region25: #{tpu_custom_call.1} parent=1 // pred_fallthru
      _
    // Predicated region
    $region26: #{tpu_custom_call.1} parent=1 // pred_check
      _
    $region27: #{tpu_custom_call.1} parent=1 // pred_check_branch
      %38 = sbr.rel (0) target = $region29
    $region28: #{tpu_custom_call.1} parent=1 // pred_region
      _
    $region29: #{tpu_custom_call.1} parent=1 // pred_fallthru
      _
    // Predicated region
    $region30: #{tpu_custom_call.1} parent=1 // pred_check
      _
    $region31: #{tpu_custom_call.1} parent=1 // pred_check_branch
      %40 = sbr.rel (0) target = $region33
    $region32: #{tpu_custom_call.1} parent=1 // pred_region
      %41 = dma.done [#allocation4], 1024
    $region33: #{tpu_custom_call.1} parent=1 // pred_fallthru
      _
    %v43 = vld [vmem:[%s0] sm:$0xff]
    %v44 = vld [vmem:[%s1] sm:$0xf]
    %46 = vset.pattern.permute.xlu0 0
    %47 = vperm.xlu0 %46, %v43
    %v48 = vpop.permute.xlu0 %47
    %v50 = vlaneseq
    %v51 = vshrl.u32 %v50, 7
    %v52 = vsub.s32 0, %v51
    %v53 = vrot.slane %v44, %v52
    %v54 = vmul.f32 %v48, %v53
    %55 = vset.pattern.permute.xlu0 1
    %56 = vperm.xlu0 %55, %v43
    %v57 = vpop.permute.xlu0 %56
    %v59 = vlaneseq
    %v60 = vshrl.u32 %v59, 7
    %v61 = vsub.s32 1, %v60
    %v62 = vrot.slane %v44, %v61
    %v63 = vmul.f32 %v57, %v62
    %v64 = vadd.f32 %v54, %v63
    %65 = vset.pattern.permute.xlu0 2
    %66 = vperm.xlu0 %65, %v43
    %v67 = vpop.permute.xlu0 %66
    %v69 = vlaneseq
    %v70 = vshrl.u32 %v69, 7
    %v71 = vsub.s32 2, %v70
    %v72 = vrot.slane %v44, %v71
    %v73 = vmul.f32 %v67, %v72
    %74 = vset.pattern.permute.xlu0 3
    %75 = vperm.xlu0 %74, %v43
    %v76 = vpop.permute.xlu0 %75
    %v78 = vlaneseq
    %v79 = vshrl.u32 %v78, 7
    %v80 = vsub.s32 3, %v79
    %v81 = vrot.slane %v44, %v80
    %v82 = vmul.f32 %v76, %v81
    %v83 = vadd.f32 %v73, %v82
    %v84 = vadd.f32 %v64, %v83
    %v85 = vld [vmem:[%s2] sm:$0x1]
    %v87 = vlaneseq
    %v88 = vshrl.u32 %v87, 7
    %v89 = vsub.s32 0, %v88
    %v90 = vrot.slane %v85, %v89
    %v92 = vadd.f32 %v84, %v90
    %v93 = vmax.f32 %v92, 0.0
    %v94 = vpack.c.bf16 %v93, %v93
    %v95 = vld [vmem:[#allocation3] sm:$0xf]
    %v96 = vld [vmem:[#allocation3 + $0x4] sm:$0xf]
    %v97 = vld [vmem:[#allocation3 + $0x8] sm:$0xf]
    %v98 = vld [vmem:[#allocation3 + $0xc] sm:$0xf]
    %v99 = vld [vmem:[#allocation3 + $0x10] sm:$0xf]
    %v100 = vld [vmem:[#allocation3 + $0x14] sm:$0xf]
    %v101 = vld [vmem:[#allocation3 + $0x18] sm:$0xf]
    %v102 = vld [vmem:[#allocation3 + $0x1c] sm:$0xf]
    %v103 = vld [vmem:[#allocation3 + $0x20] sm:$0xf]
    %v104 = vld [vmem:[#allocation3 + $0x24] sm:$0xf]
    %v105 = vld [vmem:[#allocation3 + $0x28] sm:$0xf]
    %v106 = vld [vmem:[#allocation3 + $0x2c] sm:$0xf]
    %v107 = vld [vmem:[#allocation3 + $0x30] sm:$0xf]
    %v108 = vld [vmem:[#allocation3 + $0x34] sm:$0xf]
    %v109 = vld [vmem:[#allocation3 + $0x38] sm:$0xf]
    %v110 = vld [vmem:[#allocation3 + $0x3c] sm:$0xf]
    %v111 = vld [vmem:[%s4] sm:$0x1]
    %v113 = vlaneseq
    %v114 = vshrl.u32 %v113, 7
    %v115 = vsub.s32 0, %v114
    %v116 = vrot.slane %v111, %v115
    %v134 = vunpack.c.l.b16 %v95
    %v135 = vunpack.c.l.b16 %v96
    %v136 = vunpack.c.l.b16 %v97
    %v137 = vunpack.c.l.b16 %v98
    %v138 = vunpack.c.l.b16 %v99
    %v139 = vunpack.c.l.b16 %v100
    %v140 = vunpack.c.l.b16 %v101
    %v141 = vunpack.c.l.b16 %v102
    %v142 = vunpack.c.l.b16 %v103
    %v143 = vunpack.c.l.b16 %v104
    %v144 = vunpack.c.l.b16 %v105
    %v145 = vunpack.c.l.b16 %v106
    %v146 = vunpack.c.l.b16 %v107
    %v147 = vunpack.c.l.b16 %v108
    %v148 = vunpack.c.l.b16 %v109
    %v149 = vunpack.c.l.b16 %v110
    %v150 = vpack.c.b16 %v135, %v134
    %v151 = vpack.c.b16 %v137, %v136
    %v152 = vpack.c.b16 %v139, %v138
    %v153 = vpack.c.b16 %v141, %v140
    %v154 = vpack.c.b16 %v143, %v142
    %v155 = vpack.c.b16 %v145, %v144
    %v156 = vpack.c.b16 %v147, %v146
    %v157 = vpack.c.b16 %v149, %v148
    %166 = vmatprep.subr.bf16.mxu0 0
    %167 = vmatpush1.bf16.msra.mxu0 %v150
    %168 = vmatprep.subr.bf16.mxu0 0
    %169 = vmatpush1.bf16.msra.mxu0 %v151
    %170 = vmatprep.subr.bf16.mxu0 0
    %171 = vmatpush1.bf16.msra.mxu0 %v152
    %172 = vmatprep.subr.bf16.mxu0 0
    %173 = vmatpush1.bf16.msra.mxu0 %v153
    %174 = vmatprep.subr.bf16.mxu0 0
    %175 = vmatpush1.bf16.msra.mxu0 %v154
    %176 = vmatprep.subr.bf16.mxu0 0
    %177 = vmatpush1.bf16.msra.mxu0 %v155
    %178 = vmatprep.subr.bf16.mxu0 0
    %179 = vmatpush1.bf16.msra.mxu0 %v156
    %180 = vmatprep.subr.bf16.mxu0 0
    %181 = vmatpush1.bf16.msra.mxu0 %v157
    %182 = vmatprep.subr.bf16.mxu0 0
    %183 = vmatpush1.bf16.msra.mxu0 0
    %184 = vmatprep.subr.bf16.mxu0 0
    %185 = vmatpush1.bf16.msra.mxu0 0
    %186 = vmatprep.subr.bf16.mxu0 0
    %187 = vmatpush1.bf16.msra.mxu0 0
    %188 = vmatprep.subr.bf16.mxu0 0
    %189 = vmatpush1.bf16.msra.mxu0 0
    %190 = vmatprep.subr.bf16.mxu0 0
    %191 = vmatpush1.bf16.msra.mxu0 0
    %192 = vmatprep.subr.bf16.mxu0 0
    %193 = vmatpush1.bf16.msra.mxu0 0
    %194 = vmatprep.subr.bf16.mxu0 0
    %195 = vmatpush1.bf16.msra.mxu0 0
    %196 = vmatprep.subr.bf16.mxu0 0
    %197 = vmatpush1.bf16.msra.mxu0 0
    %198 = vmatprep.mubr.bf16.mxu0 0
    %199 = vmatmul.mubr.bf16.gmra.mrb[0].mxu0 %v94
    %v200 = vpop.f32.mrb[0].mxu0
    %v201 = vadd.f32 %v116, %v200
    %v202 = vpop.f32.mrb[0].mxu0
    %v203 = vpop.f32.mrb[0].mxu0
    %v204 = vpop.f32.mrb[0].mxu0
    %205 = vdwg.mxu0
    %v206 = vmax.f32 %v201, 0.0
    %v207 = vld [vmem:[%s5] sm:$0x1]
    %v209 = vlaneseq
    %v210 = vshrl.u32 %v209, 7
    %v211 = vsub.s32 0, %v210
    %v212 = vrot.slane %v207, %v211
    %v214 = vmul.f32 %v206, %v212
    %215 = vadd.xlane.f32.xlu0 %v214
    %v216 = vpop.xlane.xlu0 %215
    %v217 = vld [vmem:[#allocation2] sm:$0x1]
    %v219 = vlaneseq
    %v220 = vshrl.u32 %v219, 7
    %v221 = vsub.s32 0, %v220
    %v222 = vrot.slane %v217, %v221
    %v224 = vadd.f32 %v216, %v222
    %vm225 = vcmask 7168
    %226 = vst.msk [vmem:[%s7] sm:$0xff] %vm225, %v224
    // Predicated region
    $region34: #{tpu_custom_call.1} parent=1 // pred_check
      _
    $region35: #{tpu_custom_call.1} parent=1 // pred_check_branch
      %228 = sbr.rel (0) target = $region37
    $region36: #{tpu_custom_call.1} parent=1 // pred_region
      _
    $region37: #{tpu_custom_call.1} parent=1 // pred_fallthru
      _
    // Predicated region
    $region38: #{tpu_custom_call.1} parent=1 // pred_check
      _
    $region39: #{tpu_custom_call.1} parent=1 // pred_check_branch
      %230 = sbr.rel (0) target = $region41
    $region40: #{tpu_custom_call.1} parent=1 // pred_region
      _
    $region41: #{tpu_custom_call.1} parent=1 // pred_fallthru
      _
    %231 = vsyncpa [#allocation4], 1

</llo_original>
